<compile_context>
chip_gen: v6e
topology: v6e:2x2x1
jax: 0.10.0
libtpu: 0.0.40
codegen_flags: <defaults>
</compile_context>

<pallas_src>
import functools

import jax
import jax.numpy as jnp
from jax.experimental import pallas as pl
from jax.experimental.pallas import tpu as pltpu


# ---------------------------------------------------------------------------
# Pallas kernel: encoder Linear+ReLU, then the regression MLP
#   num_layers = 2 (Linear+ReLU x2), final Linear -> 1, sigmoid/tanh/identity.
# One grid step processes TILE_B batch rows; weights are resident in VMEM.
# ---------------------------------------------------------------------------
def rgs_net_kernel(
    s_ref,    # [TILE_B, raw_dim]               samples (f32)
    c_ref,    # [TILE_B, cond_dim]              conditions (f32)
    we_ref,   # [raw_dim, input_dim]            encoder weight (bf16)
    be_ref,   # [1, input_dim]                  encoder bias (f32)
    w0_ref,   # [input_dim + cond_dim, layer_dim]  dense_0 weight (bf16)
    b0_ref,   # [1, layer_dim]                  dense_0 bias (f32)
    w1_ref,   # [layer_dim, layer_dim]          dense_1 weight (bf16)
    b1_ref,   # [1, layer_dim]                  dense_1 bias (f32)
    w2r_ref,  # [1, layer_dim]                  dense_2 weight, row form (f32)
    b2_ref,   # [1, 1] in SMEM                  dense_2 bias (f32 scalar)
    o_ref,    # [1, 1, TILE_B]                  lane-dense output row (f32)
    *,
    activation: str = "sigmoid",
):
    x = s_ref[...]          # f32, no redundant cast
    c = c_ref[...]          # f32

    # --- encoder: Linear + ReLU (bf16 MXU, f32 accumulate) -----------------
    enc = jnp.dot(x.astype(jnp.bfloat16), we_ref[...],
                  preferred_element_type=jnp.float32) + be_ref[...]
    enc = jnp.maximum(enc, 0.0)

    # --- dense_0 on cat((enc, cond), dim=1): single fused matmul -----------
    cat = jnp.concatenate([enc, c], axis=-1)          # (TILE_B, in+cond) f32, in-vreg
    h = jnp.dot(cat.astype(jnp.bfloat16), w0_ref[...],
                preferred_element_type=jnp.float32) + b0_ref[...]
    h = jnp.maximum(h, 0.0)

    # --- dense_1 + ReLU -----------------------------------------------------
    h = jnp.dot(h.astype(jnp.bfloat16), w1_ref[...],
                preferred_element_type=jnp.float32) + b1_ref[...]
    h = jnp.maximum(h, 0.0)

    # --- dense_2 (out dim 1), computed lane-dense: (1,L) @ (L,TILE_B) -------
    # Result is one lane-wide row (1, TILE_B) -> unmasked vector stores.
    y = jnp.dot(w2r_ref[...], h.T,
                preferred_element_type=jnp.float32) + b2_ref[0, 0]

    if activation == "sigmoid":
        y = jax.nn.sigmoid(y)       # EUP slot
    elif activation == "tanh":
        y = jnp.tanh(y)             # EUP slot
    # else: identity (matches the module's "no activation" branch)

    o_ref[0] = y.astype(o_ref.dtype)


# ---------------------------------------------------------------------------
# Wrapper: batch-tiled pallas_call
# ---------------------------------------------------------------------------
@functools.partial(jax.jit, static_argnames=("tile_b", "activation"))
def rgs_net_forward(samples, conditions, params, *, tile_b=512, activation="sigmoid"):
    B, raw_dim = samples.shape
    cond_dim = conditions.shape[1]
    input_dim = params["we"].shape[1]
    layer_dim = params["w1"].shape[0]

    # Pad batch up to a multiple of the tile; padded rows are sliced off below.
    b_pad = ((B + tile_b - 1) // tile_b) * tile_b
    if b_pad != B:
        samples = jnp.pad(samples, ((0, b_pad - B), (0, 0)))
        conditions = jnp.pad(conditions, ((0, b_pad - B), (0, 0)))
    num_tiles = b_pad // tile_b

    vmem = pltpu.MemorySpace.VMEM
    smem = pltpu.MemorySpace.SMEM

    in_specs = [
        # batch-tiled activations
        pl.BlockSpec((tile_b, raw_dim), lambda i: (i, 0), memory_space=vmem),
        pl.BlockSpec((tile_b, cond_dim), lambda i: (i, 0), memory_space=vmem),
        # weights / biases: constant index_map -> VMEM-resident across grid
        pl.BlockSpec((raw_dim, input_dim), lambda i: (0, 0), memory_space=vmem),
        pl.BlockSpec((1, input_dim), lambda i: (0, 0), memory_space=vmem),
        pl.BlockSpec((input_dim + cond_dim, layer_dim), lambda i: (0, 0),
                     memory_space=vmem),
        pl.BlockSpec((1, layer_dim), lambda i: (0, 0), memory_space=vmem),
        pl.BlockSpec((layer_dim, layer_dim), lambda i: (0, 0), memory_space=vmem),
        pl.BlockSpec((1, layer_dim), lambda i: (0, 0), memory_space=vmem),
        pl.BlockSpec((1, layer_dim), lambda i: (0, 0), memory_space=vmem),
        # scalar output bias in SMEM (don't pad a 4-byte value to an (8,128) tile)
        pl.BlockSpec(memory_space=smem),
    ]
    out_specs = pl.BlockSpec((1, 1, tile_b), lambda i: (i, 0, 0), memory_space=vmem)
    out_shape = jax.ShapeDtypeStruct((num_tiles, 1, tile_b), jnp.float32)

    out = pl.pallas_call(
        functools.partial(rgs_net_kernel, activation=activation),
        grid=(num_tiles,),
        in_specs=in_specs,
        out_specs=out_specs,
        out_shape=out_shape,
        compiler_params=pltpu.CompilerParams(
            dimension_semantics=("parallel",),
        ),
    )(
        samples, conditions,
        params["we"], params["be"],
        params["w0"], params["b0"],
        params["w1"], params["b1"],
        params["w2r"], params["b2"],
    )
    # (num_tiles, 1, TILE_B) row-major == batch order -> (B, 1)
    return out.reshape(b_pad, 1)[:B]


# ---------------------------------------------------------------------------
# Parameter init (xavier-normal weights ~ basic_weight_init; small random
# biases ~ nn.Linear defaults).  Big-matmul weights stored in bfloat16.
# ---------------------------------------------------------------------------
def init_params(key, raw_dim, input_dim, condition_dim, layer_dim):
    def xavier(k, fan_in, fan_out):
        std = (2.0 / (fan_in + fan_out)) ** 0.5
        return std * jax.random.normal(k, (fan_in, fan_out), dtype=jnp.float32)

    ks = jax.random.split(key, 8)
    return {
        # encoder (modeled Linear+ReLU)
        "we": xavier(ks[0], raw_dim, input_dim).astype(jnp.bfloat16),
        "be": 0.1 * jax.random.normal(ks[1], (1, input_dim), dtype=jnp.float32),
        # dense_0 acts on cat(enc, cond)
        "w0": xavier(ks[2], input_dim + condition_dim, layer_dim).astype(jnp.bfloat16),
        "b0": 0.1 * jax.random.normal(ks[3], (1, layer_dim), dtype=jnp.float32),
        # dense_1
        "w1": xavier(ks[4], layer_dim, layer_dim).astype(jnp.bfloat16),
        "b1": 0.1 * jax.random.normal(ks[5], (1, layer_dim), dtype=jnp.float32),
        # dense_2 -> 1, stored as a lane-wide row (1, layer_dim), f32
        "w2r": xavier(ks[6], layer_dim, 1).T,
        "b2": 0.1 * jax.random.normal(ks[7], (1, 1), dtype=jnp.float32),
    }


# Pure-JAX reference (same bf16-weight / f32-accumulate recipe as the kernel).
def rgs_net_ref(samples, conditions, p, activation="sigmoid"):
    def dot_bf16(a, w):
        return jnp.dot(a.astype(jnp.bfloat16), w.astype(jnp.bfloat16),
                       preferred_element_type=jnp.float32)

    enc = jax.nn.relu(dot_bf16(samples, p["we"]) + p["be"])
    x = jnp.concatenate([enc, conditions], axis=1)
    h = jax.nn.relu(dot_bf16(x, p["w0"]) + p["b0"])
    h = jax.nn.relu(dot_bf16(h, p["w1"]) + p["b1"])
    y = h @ p["w2r"].T + p["b2"]
    if activation == "sigmoid":
        return jax.nn.sigmoid(y)
    if activation == "tanh":
        return jnp.tanh(y)
    return y


if __name__ == "__main__":
    # Small shapes consistent with the module's forward.
    B = 200          # batch (non-multiple of the tile -> exercises padding)
    RAW_DIM = 32     # raw sample feature dim (encoder input)
    INPUT_DIM = 16   # encoder output dim (== RgsNet input_dim)
    COND_DIM = 8     # condition_dim
    LAYER_DIM = 32   # layer_dim
    TILE_B = 128     # batch tile -> grid of 2 steps; lane-dense 128-wide output
    # num_layers = 2, activation = 'sigmoid'

    key = jax.random.PRNGKey(0)
    k_s, k_c, k_p = jax.random.split(key, 3)
    samples = jax.random.normal(k_s, (B, RAW_DIM), dtype=jnp.float32)
    conditions = jax.random.normal(k_c, (B, COND_DIM), dtype=jnp.float32)
    params = init_params(k_p, RAW_DIM, INPUT_DIM, COND_DIM, LAYER_DIM)

    out = rgs_net_forward(samples, conditions, params,
                          tile_b=TILE_B, activation="sigmoid")
    out = jax.block_until_ready(out)

    ref = rgs_net_ref(samples, conditions, params, activation="sigmoid")
    assert out.shape == (B, 1)
    max_err = float(jnp.max(jnp.abs(out - ref)))
    assert jnp.allclose(out, ref, atol=1e-4, rtol=1e-4), max_err

    print("KERNEL_OK")
</pallas_src>

<mosaic_0001>
module attributes {stable_mosaic.version = 11 : i64} {
  func.func @rgs_net_kernel(%arg0: i32, %arg1: memref<128x32xf32, #tpu.memory_space<vmem>>, %arg2: memref<128x8xf32, #tpu.memory_space<vmem>>, %arg3: memref<32x16xbf16, #tpu.memory_space<vmem>>, %arg4: memref<1x16xf32, #tpu.memory_space<vmem>>, %arg5: memref<24x32xbf16, #tpu.memory_space<vmem>>, %arg6: memref<1x32xf32, #tpu.memory_space<vmem>>, %arg7: memref<32x32xbf16, #tpu.memory_space<vmem>>, %arg8: memref<1x32xf32, #tpu.memory_space<vmem>>, %arg9: memref<1x32xf32, #tpu.memory_space<vmem>>, %arg10: memref<1x1xf32, #tpu.memory_space<smem>>, %arg11: memref<1x1x128xf32, #tpu.memory_space<vmem>>) attributes {dimension_semantics = [#tpu.dimension_semantics<parallel>], iteration_bounds = array<i64: 2>, scalar_prefetch = 0 : i64, scratch_operands = 0 : i64, tpu.core_type = #tpu.core_type<tc>, window_params = [{transform_indices = @transform_0, window_bounds = array<i64: 128, 32>}, {transform_indices = @transform_1, window_bounds = array<i64: 128, 8>}, {pipeline_mode = #tpu.pipeline_mode<synchronous>, transform_indices = @transform_2, window_bounds = array<i64: 32, 16>}, {pipeline_mode = #tpu.pipeline_mode<synchronous>, transform_indices = @transform_3, window_bounds = array<i64: 1, 16>}, {pipeline_mode = #tpu.pipeline_mode<synchronous>, transform_indices = @transform_4, window_bounds = array<i64: 24, 32>}, {pipeline_mode = #tpu.pipeline_mode<synchronous>, transform_indices = @transform_5, window_bounds = array<i64: 1, 32>}, {pipeline_mode = #tpu.pipeline_mode<synchronous>, transform_indices = @transform_6, window_bounds = array<i64: 32, 32>}, {pipeline_mode = #tpu.pipeline_mode<synchronous>, transform_indices = @transform_7, window_bounds = array<i64: 1, 32>}, {pipeline_mode = #tpu.pipeline_mode<synchronous>, transform_indices = @transform_8, window_bounds = array<i64: 1, 32>}, {transform_indices = @transform_9, window_bounds = array<i64: 1, 1>}, {transform_indices = @transform_10, window_bounds = array<i64: 1, 1, 128>}]} {
    %c0 = arith.constant 0 : index
    %c0_0 = arith.constant 0 : index
    %0 = vector.load %arg1[%c0, %c0_0] : memref<128x32xf32, #tpu.memory_space<vmem>>, vector<128x32xf32>
    %c0_1 = arith.constant 0 : index
    %c0_2 = arith.constant 0 : index
    %1 = vector.load %arg2[%c0_1, %c0_2] : memref<128x8xf32, #tpu.memory_space<vmem>>, vector<128x8xf32>
    %2 = arith.truncf %0 : vector<128x32xf32> to vector<128x32xbf16>
    %c0_3 = arith.constant 0 : index
    %c0_4 = arith.constant 0 : index
    %3 = vector.load %arg3[%c0_3, %c0_4] : memref<32x16xbf16, #tpu.memory_space<vmem>>, vector<32x16xbf16>
    %cst = arith.constant dense<0.000000e+00> : vector<128x16xf32>
    %4 = tpu.matmul %2, %3, %cst {dimension_numbers = #tpu.dot_dimension_numbers<[1], [0], [0], [1], [0, 0, 1, 1], [], []>} : vector<128x32xbf16>, vector<32x16xbf16>, vector<128x16xf32> -> vector<128x16xf32>
    %c0_5 = arith.constant 0 : index
    %c0_6 = arith.constant 0 : index
    %5 = vector.load %arg4[%c0_5, %c0_6] : memref<1x16xf32, #tpu.memory_space<vmem>>, vector<1x16xf32>
    %6 = vector.broadcast %5 : vector<1x16xf32> to vector<128x16xf32>
    %7 = arith.addf %4, %6 : vector<128x16xf32>
    %cst_7 = arith.constant 0.000000e+00 : f32
    %8 = vector.broadcast %cst_7 : f32 to vector<128x16xf32>
    %9 = arith.maximumf %7, %8 : vector<128x16xf32>
    %10 = tpu.concatenate %9, %1 in 1 : vector<128x16xf32>, vector<128x8xf32> -> vector<128x24xf32>
    %11 = arith.truncf %10 : vector<128x24xf32> to vector<128x24xbf16>
    %c0_8 = arith.constant 0 : index
    %c0_9 = arith.constant 0 : index
    %12 = vector.load %arg5[%c0_8, %c0_9] : memref<24x32xbf16, #tpu.memory_space<vmem>>, vector<24x32xbf16>
    %cst_10 = arith.constant dense<0.000000e+00> : vector<128x32xf32>
    %13 = tpu.matmul %11, %12, %cst_10 {dimension_numbers = #tpu.dot_dimension_numbers<[1], [0], [0], [1], [0, 0, 1, 1], [], []>} : vector<128x24xbf16>, vector<24x32xbf16>, vector<128x32xf32> -> vector<128x32xf32>
    %c0_11 = arith.constant 0 : index
    %c0_12 = arith.constant 0 : index
    %14 = vector.load %arg6[%c0_11, %c0_12] : memref<1x32xf32, #tpu.memory_space<vmem>>, vector<1x32xf32>
    %15 = vector.broadcast %14 : vector<1x32xf32> to vector<128x32xf32>
    %16 = arith.addf %13, %15 : vector<128x32xf32>
    %cst_13 = arith.constant 0.000000e+00 : f32
    %17 = vector.broadcast %cst_13 : f32 to vector<128x32xf32>
    %18 = arith.maximumf %16, %17 : vector<128x32xf32>
    %19 = arith.truncf %18 : vector<128x32xf32> to vector<128x32xbf16>
    %c0_14 = arith.constant 0 : index
    %c0_15 = arith.constant 0 : index
    %20 = vector.load %arg7[%c0_14, %c0_15] : memref<32x32xbf16, #tpu.memory_space<vmem>>, vector<32x32xbf16>
    %cst_16 = arith.constant dense<0.000000e+00> : vector<128x32xf32>
    %21 = tpu.matmul %19, %20, %cst_16 {dimension_numbers = #tpu.dot_dimension_numbers<[1], [0], [0], [1], [0, 0, 1, 1], [], []>} : vector<128x32xbf16>, vector<32x32xbf16>, vector<128x32xf32> -> vector<128x32xf32>
    %c0_17 = arith.constant 0 : index
    %c0_18 = arith.constant 0 : index
    %22 = vector.load %arg8[%c0_17, %c0_18] : memref<1x32xf32, #tpu.memory_space<vmem>>, vector<1x32xf32>
    %23 = vector.broadcast %22 : vector<1x32xf32> to vector<128x32xf32>
    %24 = arith.addf %21, %23 : vector<128x32xf32>
    %cst_19 = arith.constant 0.000000e+00 : f32
    %25 = vector.broadcast %cst_19 : f32 to vector<128x32xf32>
    %26 = arith.maximumf %24, %25 : vector<128x32xf32>
    %c0_20 = arith.constant 0 : index
    %c0_21 = arith.constant 0 : index
    %27 = vector.load %arg9[%c0_20, %c0_21] : memref<1x32xf32, #tpu.memory_space<vmem>>, vector<1x32xf32>
    %28 = tpu.transpose %26, [1, 0] : vector<128x32xf32> -> vector<32x128xf32>
    %cst_22 = arith.constant dense<0.000000e+00> : vector<1x128xf32>
    %29 = tpu.matmul %27, %28, %cst_22 {dimension_numbers = #tpu.dot_dimension_numbers<[1], [0], [0], [1], [0, 0, 1, 1], [], []>} : vector<1x32xf32>, vector<32x128xf32>, vector<1x128xf32> -> vector<1x128xf32>
    %c0_23 = arith.constant 0 : index
    %c0_24 = arith.constant 0 : index
    %30 = memref.load %arg10[%c0_23, %c0_24] : memref<1x1xf32, #tpu.memory_space<smem>>
    %31 = vector.broadcast %30 : f32 to vector<1x128xf32>
    %32 = arith.addf %29, %31 : vector<1x128xf32>
    %33 = arith.negf %32 : vector<1x128xf32>
    %34 = math.exp %33 : vector<1x128xf32>
    %cst_25 = arith.constant 1.000000e+00 : f32
    %35 = vector.broadcast %cst_25 : f32 to vector<1x128xf32>
    %36 = arith.addf %35, %34 : vector<1x128xf32>
    %37 = arith.divf %35, %36 : vector<1x128xf32>
    %c0_26 = arith.constant 0 : index
    %c0_27 = arith.constant 0 : index
    %c0_28 = arith.constant 0 : index
    %38 = vector.load %arg11[%c0_26, %c0_27, %c0_28] : memref<1x1x128xf32, #tpu.memory_space<vmem>>, vector<1x1x128xf32>
    %39 = vector.shape_cast %38 : vector<1x1x128xf32> to vector<1x128xf32>
    %40 = vector.shape_cast %37 : vector<1x128xf32> to vector<1x1x128xf32>
    tpu.vector_store %arg11[%c0_26, %c0_27, %c0_28], %40 {strides = array<i32>} : memref<1x1x128xf32, #tpu.memory_space<vmem>>, vector<1x1x128xf32>,
    return
  }
  func.func @transform_0(%arg0: i32) -> (i32, i32) {
    %c0_i32 = arith.constant 0 : i32
    %c0_i32_0 = arith.constant 0 : i32
    return %arg0, %c0_i32 : i32, i32
  }
  func.func @transform_1(%arg0: i32) -> (i32, i32) {
    %c0_i32 = arith.constant 0 : i32
    %c0_i32_0 = arith.constant 0 : i32
    return %arg0, %c0_i32 : i32, i32
  }
  func.func @transform_2(%arg0: i32) -> (i32, i32) {
    %c0_i32 = arith.constant 0 : i32
    %c0_i32_0 = arith.constant 0 : i32
    %c0_i32_1 = arith.constant 0 : i32
    return %c0_i32, %c0_i32_0 : i32, i32
  }
  func.func @transform_3(%arg0: i32) -> (i32, i32) {
    %c0_i32 = arith.constant 0 : i32
    %c0_i32_0 = arith.constant 0 : i32
    %c0_i32_1 = arith.constant 0 : i32
    return %c0_i32, %c0_i32_0 : i32, i32
  }
  func.func @transform_4(%arg0: i32) -> (i32, i32) {
    %c0_i32 = arith.constant 0 : i32
    %c0_i32_0 = arith.constant 0 : i32
    %c0_i32_1 = arith.constant 0 : i32
    return %c0_i32, %c0_i32_0 : i32, i32
  }
  func.func @transform_5(%arg0: i32) -> (i32, i32) {
    %c0_i32 = arith.constant 0 : i32
    %c0_i32_0 = arith.constant 0 : i32
    %c0_i32_1 = arith.constant 0 : i32
    return %c0_i32, %c0_i32_0 : i32, i32
  }
  func.func @transform_6(%arg0: i32) -> (i32, i32) {
    %c0_i32 = arith.constant 0 : i32
    %c0_i32_0 = arith.constant 0 : i32
    %c0_i32_1 = arith.constant 0 : i32
    return %c0_i32, %c0_i32_0 : i32, i32
  }
  func.func @transform_7(%arg0: i32) -> (i32, i32) {
    %c0_i32 = arith.constant 0 : i32
    %c0_i32_0 = arith.constant 0 : i32
    %c0_i32_1 = arith.constant 0 : i32
    return %c0_i32, %c0_i32_0 : i32, i32
  }
  func.func @transform_8(%arg0: i32) -> (i32, i32) {
    %c0_i32 = arith.constant 0 : i32
    %c0_i32_0 = arith.constant 0 : i32
    %c0_i32_1 = arith.constant 0 : i32
    return %c0_i32, %c0_i32_0 : i32, i32
  }
  func.func @transform_9(%arg0: i32) -> (i32, i32) {
    %c0_i32 = arith.constant 0 : i32
    %c0_i32_0 = arith.constant 0 : i32
    %c0_i32_1 = arith.constant 0 : i32
    return %c0_i32, %c0_i32_0 : i32, i32
  }
  func.func @transform_10(%arg0: i32) -> (i32, i32, i32) {
    %c0_i32 = arith.constant 0 : i32
    %c0_i32_0 = arith.constant 0 : i32
    %c0_i32_1 = arith.constant 0 : i32
    return %arg0, %c0_i32, %c0_i32_0 : i32, i32, i32
  }
}

</mosaic_0001>

<llo_original>
// kernel: rgs_net_forward.1
$region0: #{rgs_net_forward.1}
  #allocation0 [shape = 'u32[]', space=smem, size = 0x4, offset = 0x4, fixed_abs, tag = 'smem constant byte address 0x4 - core index']
  #allocation1 [shape = 'u32[144,128]{1,0:T(1,128)}', space=vmem, size = 0x12000, scoped, tag = 'internal scratch']
  #allocation2 [shape = 'f32[1,1]{1,0:T(1,128)S(6)}', space=smem, size = 0x200, scoped, tag = 'scoped memory for rgs_net_forward.1']
  %s0 = inlined_call_operand.vmem [shape: f32[256,32], index: 0, kind: input, shape index: {}]
  %s1 = inlined_call_operand.vmem [shape: f32[256,8], index: 1, kind: input, shape index: {}]
  %s2 = inlined_call_operand.vmem [shape: bf16[32,16], index: 2, kind: input, shape index: {}]
  %s3 = inlined_call_operand.vmem [shape: f32[1,16], index: 3, kind: input, shape index: {}]
  %s4 = inlined_call_operand.vmem [shape: bf16[24,32], index: 4, kind: input, shape index: {}]
  %s5 = inlined_call_operand.vmem [shape: f32[1,32], index: 5, kind: input, shape index: {}]
  %s6 = inlined_call_operand.vmem [shape: bf16[32,32], index: 6, kind: input, shape index: {}]
  %s7 = inlined_call_operand.vmem [shape: f32[1,32], index: 7, kind: input, shape index: {}]
  %s8 = inlined_call_operand.vmem [shape: f32[1,32], index: 8, kind: input, shape index: {}]
  %s9 = inlined_call_operand.<no memory space> [shape: f32[1,1], index: 9, kind: input, shape index: {}]
  %s10 = inlined_call_operand.hbm [shape: f32[2,1,128], index: 10, kind: output, shape index: {}]
  %s11 = sld [smem:[#allocation0]]
  $region73: #{rgs_net_forward.1} parent=0
    _
  %s13 = ssub.s32 1, %s11
  %s14 = scalar_select 0, %s13, %s11
  %15 = sst [smem:[#allocation2]] %s9
  $region1: #{rgs_net_forward.1} parent=0
    #allocation3 [shape = 'u8[1024]{0}', space=vmem, size = 0x400, scoped, tag = 'output window, operand 0']
    #allocation4 [shape = 's32[2]{0}', space=sflag, size = 0x8, scoped, tag = 'scoped memory for rgs_net_forward.1']
    %16 = vsyncpa [#allocation4], 0
    %s17 = scalar_lea.sflag [#allocation4], 1
    %18 = vsyncpa %s17, 0
    loop: start=0, step=1, limit=4
    $region2: #{rgs_net_forward.1} parent=1 // loop_pre_header
      _
    $region3: #{rgs_net_forward.1} parent=1 // loop_header
      %s20 = sphi 0, %s24
      %p21 = scmp.ge.s32.totalorder %s20, 4
      %s30 = sphi 0, %s32
      %s33 = sphi 0, %s30
      %s34 = sphi 0, %s33
      %s50 = sphi 0, %s34
      %s56 = sphi 0, %s58
      %s59 = sphi 0, %s56
      %s60 = sphi 0, %s59
      %s76 = sphi 0, %s60
      %s80 = sphi 0, %s80
      %s82 = sphi 0, %s80
      %s83 = sphi 0, %s82
      %s97 = sphi 0, %s83
      %s101 = sphi 0, %s101
      %s103 = sphi 0, %s101
      %s104 = sphi 0, %s103
      %s118 = sphi 0, %s104
      %s122 = sphi 0, %s122
      %s124 = sphi 0, %s122
      %s125 = sphi 0, %s124
      %s139 = sphi 0, %s125
      %s143 = sphi 0, %s143
      %s145 = sphi 0, %s143
      %s146 = sphi 0, %s145
      %s160 = sphi 0, %s146
      %s164 = sphi 0, %s164
      %s166 = sphi 0, %s164
      %s167 = sphi 0, %s166
      %s181 = sphi 0, %s167
      %s185 = sphi 0, %s185
      %s187 = sphi 0, %s185
      %s188 = sphi 0, %s187
      %s202 = sphi 0, %s188
      %s206 = sphi 0, %s206
      %s208 = sphi 0, %s206
      %s209 = sphi 0, %s208
      %s223 = sphi 0, %s209
      %s227 = sphi 0, %s227
      %s229 = sphi 0, %s227
      %s230 = sphi 0, %s229
      %s244 = sphi 0, %s230
      %s250 = sphi 0, %s252
      %s253 = sphi 0, %s250
      %s254 = sphi 0, %s253
      %s270 = sphi 0, %s254
    $region4: #{rgs_net_forward.1} parent=1 // loop_header_branch
      %23 = sbr.rel (%p21) target = $region8
    $region5: #{rgs_net_forward.1} parent=1 // loop_body
      %s25 = ssub.s32 %s20, 1
      %s26 = ssub.s32 %s20, 2
      %s27 = sadd.s32 %s20, 1
      %s28 = ssub.s32 %s20, %s27
      %p29 = scmp.eq.s32.totalorder %s28, 0
      %s31 = sadd.s32 %s30, 1
      %s32 = scalar_select %p29, %s30, %s31
      %p35 = pneg %p29
      %p36 = scmp.eq.s32.totalorder %s20, 1
      %p37 = por %p35, %p36
      %p38 = scmp.ne.s32.totalorder %s30, %s33
      %p39 = scmp.eq.s32.totalorder %s20, 0
      %p40 = por %p38, %p39
      %p41 = scmp.ne.s32.totalorder %s30, %s33
      %p42 = scmp.eq.s32.totalorder %s25, 1
      %p43 = por %p41, %p42
      %p44 = scmp.ne.s32.totalorder %s33, %s34
      %p45 = scmp.eq.s32.totalorder %s25, 0
      %p46 = por %p44, %p45
      %p47 = scmp.ne.s32.totalorder %s33, %s34
      %p48 = scmp.eq.s32.totalorder %s26, 1
      %p49 = por %p47, %p48
      %p51 = scmp.ne.s32.totalorder %s34, %s50
      %p52 = scmp.eq.s32.totalorder %s26, 0
      %p53 = por %p51, %p52
      %s54 = ssub.s32 %s20, %s27
      %p55 = scmp.eq.s32.totalorder %s54, 0
      %s57 = sadd.s32 %s56, 1
      %s58 = scalar_select %p55, %s56, %s57
      %p61 = pneg %p55
      %p62 = scmp.eq.s32.totalorder %s20, 1
      %p63 = por %p61, %p62
      %p64 = scmp.ne.s32.totalorder %s56, %s59
      %p65 = scmp.eq.s32.totalorder %s20, 0
      %p66 = por %p64, %p65
      %p67 = scmp.ne.s32.totalorder %s56, %s59
      %p68 = scmp.eq.s32.totalorder %s25, 1
      %p69 = por %p67, %p68
      %p70 = scmp.ne.s32.totalorder %s59, %s60
      %p71 = scmp.eq.s32.totalorder %s25, 0
      %p72 = por %p70, %p71
      %p73 = scmp.ne.s32.totalorder %s59, %s60
      %p74 = scmp.eq.s32.totalorder %s26, 1
      %p75 = por %p73, %p74
      %p77 = scmp.ne.s32.totalorder %s60, %s76
      %p78 = scmp.eq.s32.totalorder %s26, 0
      %p79 = por %p77, %p78
      %s81 = sadd.s32 %s80, 1
      %p84 = scmp.eq.s32.totalorder %s20, 1
      %p85 = scmp.ne.s32.totalorder %s80, %s82
      %p86 = scmp.eq.s32.totalorder %s20, 0
      %p87 = por %p85, %p86
      %p88 = scmp.ne.s32.totalorder %s80, %s82
      %p89 = scmp.eq.s32.totalorder %s25, 1
      %p90 = por %p88, %p89
      %p91 = scmp.ne.s32.totalorder %s82, %s83
      %p92 = scmp.eq.s32.totalorder %s25, 0
      %p93 = por %p91, %p92
      %p94 = scmp.ne.s32.totalorder %s82, %s83
      %p95 = scmp.eq.s32.totalorder %s26, 1
      %p96 = por %p94, %p95
      %p98 = scmp.ne.s32.totalorder %s83, %s97
      %p99 = scmp.eq.s32.totalorder %s26, 0
      %p100 = por %p98, %p99
      %s102 = sadd.s32 %s101, 1
      %p105 = scmp.eq.s32.totalorder %s20, 1
      %p106 = scmp.ne.s32.totalorder %s101, %s103
      %p107 = scmp.eq.s32.totalorder %s20, 0
      %p108 = por %p106, %p107
      %p109 = scmp.ne.s32.totalorder %s101, %s103
      %p110 = scmp.eq.s32.totalorder %s25, 1
      %p111 = por %p109, %p110
      %p112 = scmp.ne.s32.totalorder %s103, %s104
      %p113 = scmp.eq.s32.totalorder %s25, 0
      %p114 = por %p112, %p113
      %p115 = scmp.ne.s32.totalorder %s103, %s104
      %p116 = scmp.eq.s32.totalorder %s26, 1
      %p117 = por %p115, %p116
      %p119 = scmp.ne.s32.totalorder %s104, %s118
      %p120 = scmp.eq.s32.totalorder %s26, 0
      %p121 = por %p119, %p120
      %s123 = sadd.s32 %s122, 1
      %p126 = scmp.eq.s32.totalorder %s20, 1
      %p127 = scmp.ne.s32.totalorder %s122, %s124
      %p128 = scmp.eq.s32.totalorder %s20, 0
      %p129 = por %p127, %p128
      %p130 = scmp.ne.s32.totalorder %s122, %s124
      %p131 = scmp.eq.s32.totalorder %s25, 1
      %p132 = por %p130, %p131
      %p133 = scmp.ne.s32.totalorder %s124, %s125
      %p134 = scmp.eq.s32.totalorder %s25, 0
      %p135 = por %p133, %p134
      %p136 = scmp.ne.s32.totalorder %s124, %s125
      %p137 = scmp.eq.s32.totalorder %s26, 1
      %p138 = por %p136, %p137
      %p140 = scmp.ne.s32.totalorder %s125, %s139
      %p141 = scmp.eq.s32.totalorder %s26, 0
      %p142 = por %p140, %p141
      %s144 = sadd.s32 %s143, 1
      %p147 = scmp.eq.s32.totalorder %s20, 1
      %p148 = scmp.ne.s32.totalorder %s143, %s145
      %p149 = scmp.eq.s32.totalorder %s20, 0
      %p150 = por %p148, %p149
      %p151 = scmp.ne.s32.totalorder %s143, %s145
      %p152 = scmp.eq.s32.totalorder %s25, 1
      %p153 = por %p151, %p152
      %p154 = scmp.ne.s32.totalorder %s145, %s146
      %p155 = scmp.eq.s32.totalorder %s25, 0
      %p156 = por %p154, %p155
      %p157 = scmp.ne.s32.totalorder %s145, %s146
      %p158 = scmp.eq.s32.totalorder %s26, 1
      %p159 = por %p157, %p158
      %p161 = scmp.ne.s32.totalorder %s146, %s160
      %p162 = scmp.eq.s32.totalorder %s26, 0
      %p163 = por %p161, %p162
      %s165 = sadd.s32 %s164, 1
      %p168 = scmp.eq.s32.totalorder %s20, 1
      %p169 = scmp.ne.s32.totalorder %s164, %s166
      %p170 = scmp.eq.s32.totalorder %s20, 0
      %p171 = por %p169, %p170
      %p172 = scmp.ne.s32.totalorder %s164, %s166
      %p173 = scmp.eq.s32.totalorder %s25, 1
      %p174 = por %p172, %p173
      %p175 = scmp.ne.s32.totalorder %s166, %s167
      %p176 = scmp.eq.s32.totalorder %s25, 0
      %p177 = por %p175, %p176
      %p178 = scmp.ne.s32.totalorder %s166, %s167
      %p179 = scmp.eq.s32.totalorder %s26, 1
      %p180 = por %p178, %p179
      %p182 = scmp.ne.s32.totalorder %s167, %s181
      %p183 = scmp.eq.s32.totalorder %s26, 0
      %p184 = por %p182, %p183
      %s186 = sadd.s32 %s185, 1
      %p189 = scmp.eq.s32.totalorder %s20, 1
      %p190 = scmp.ne.s32.totalorder %s185, %s187
      %p191 = scmp.eq.s32.totalorder %s20, 0
      %p192 = por %p190, %p191
      %p193 = scmp.ne.s32.totalorder %s185, %s187
      %p194 = scmp.eq.s32.totalorder %s25, 1
      %p195 = por %p193, %p194
      %p196 = scmp.ne.s32.totalorder %s187, %s188
      %p197 = scmp.eq.s32.totalorder %s25, 0
      %p198 = por %p196, %p197
      %p199 = scmp.ne.s32.totalorder %s187, %s188
      %p200 = scmp.eq.s32.totalorder %s26, 1
      %p201 = por %p199, %p200
      %p203 = scmp.ne.s32.totalorder %s188, %s202
      %p204 = scmp.eq.s32.totalorder %s26, 0
      %p205 = por %p203, %p204
      %s207 = sadd.s32 %s206, 1
      %p210 = scmp.eq.s32.totalorder %s20, 1
      %p211 = scmp.ne.s32.totalorder %s206, %s208
      %p212 = scmp.eq.s32.totalorder %s20, 0
      %p213 = por %p211, %p212
      %p214 = scmp.ne.s32.totalorder %s206, %s208
      %p215 = scmp.eq.s32.totalorder %s25, 1
      %p216 = por %p214, %p215
      %p217 = scmp.ne.s32.totalorder %s208, %s209
      %p218 = scmp.eq.s32.totalorder %s25, 0
      %p219 = por %p217, %p218
      %p220 = scmp.ne.s32.totalorder %s208, %s209
      %p221 = scmp.eq.s32.totalorder %s26, 1
      %p222 = por %p220, %p221
      %p224 = scmp.ne.s32.totalorder %s209, %s223
      %p225 = scmp.eq.s32.totalorder %s26, 0
      %p226 = por %p224, %p225
      %s228 = sadd.s32 %s227, 1
      %p231 = scmp.eq.s32.totalorder %s20, 1
      %p232 = scmp.ne.s32.totalorder %s227, %s229
      %p233 = scmp.eq.s32.totalorder %s20, 0
      %p234 = por %p232, %p233
      %p235 = scmp.ne.s32.totalorder %s227, %s229
      %p236 = scmp.eq.s32.totalorder %s25, 1
      %p237 = por %p235, %p236
      %p238 = scmp.ne.s32.totalorder %s229, %s230
      %p239 = scmp.eq.s32.totalorder %s25, 0
      %p240 = por %p238, %p239
      %p241 = scmp.ne.s32.totalorder %s229, %s230
      %p242 = scmp.eq.s32.totalorder %s26, 1
      %p243 = por %p241, %p242
      %p245 = scmp.ne.s32.totalorder %s230, %s244
      %p246 = scmp.eq.s32.totalorder %s26, 0
      %p247 = por %p245, %p246
      %s248 = ssub.s32 %s20, %s27
      %p249 = scmp.eq.s32.totalorder %s248, 0
      %s251 = sadd.s32 %s250, 1
      %s252 = scalar_select %p249, %s250, %s251
      %p255 = pneg %p249
      %p256 = scmp.eq.s32.totalorder %s20, 1
      %p257 = por %p255, %p256
      %p258 = scmp.ne.s32.totalorder %s250, %s253
      %p259 = scmp.eq.s32.totalorder %s20, 0
      %p260 = por %p258, %p259
      %p261 = scmp.ne.s32.totalorder %s250, %s253
      %p262 = scmp.eq.s32.totalorder %s25, 1
      %p263 = por %p261, %p262
      %p264 = scmp.ne.s32.totalorder %s253, %s254
      %p265 = scmp.eq.s32.totalorder %s25, 0
      %p266 = por %p264, %p265
      %p267 = scmp.ne.s32.totalorder %s253, %s254
      %p268 = scmp.eq.s32.totalorder %s26, 1
      %p269 = por %p267, %p268
      %p271 = scmp.ne.s32.totalorder %s254, %s270
      %p272 = scmp.eq.s32.totalorder %s26, 0
      %p273 = por %p271, %p272
      %p274 = scmp.le.s32.totalorder 1, %s20
      %p275 = scmp.lt.s32.totalorder %s20, 3
      %p276 = pnand %p274, %p275
      %p277 = pneg %p276
      // Predicated region
      $region9: #{rgs_net_forward.1} parent=5 // pred_check
        _
      $region10: #{rgs_net_forward.1} parent=5 // pred_check_branch
        %279 = sbr.rel (%p276) target = $region12
      $region11: #{rgs_net_forward.1} parent=5 // pred_region
        %s280 = ssub.s32 %s20, 1
        // Predicated region
        $region13: #{rgs_net_forward.1} parent=11 // pred_check
          %p281 = pneg %p93
        $region14: #{rgs_net_forward.1} parent=11 // pred_check_branch
          %283 = sbr.rel (%p281) target = $region16
        $region15: #{rgs_net_forward.1} parent=11 // pred_region
          _
        $region16: #{rgs_net_forward.1} parent=11 // pred_fallthru
          _
        // Predicated region
        $region17: #{rgs_net_forward.1} parent=11 // pred_check
          %p284 = pneg %p114
        $region18: #{rgs_net_forward.1} parent=11 // pred_check_branch
          %286 = sbr.rel (%p284) target = $region20
        $region19: #{rgs_net_forward.1} parent=11 // pred_region
          _
        $region20: #{rgs_net_forward.1} parent=11 // pred_fallthru
          _
        // Predicated region
        $region21: #{rgs_net_forward.1} parent=11 // pred_check
          %p287 = pneg %p135
        $region22: #{rgs_net_forward.1} parent=11 // pred_check_branch
          %289 = sbr.rel (%p287) target = $region24
        $region23: #{rgs_net_forward.1} parent=11 // pred_region
          _
        $region24: #{rgs_net_forward.1} parent=11 // pred_fallthru
          _
        // Predicated region
        $region25: #{rgs_net_forward.1} parent=11 // pred_check
          %p290 = pneg %p156
        $region26: #{rgs_net_forward.1} parent=11 // pred_check_branch
          %292 = sbr.rel (%p290) target = $region28
        $region27: #{rgs_net_forward.1} parent=11 // pred_region
          _
        $region28: #{rgs_net_forward.1} parent=11 // pred_fallthru
          _
        // Predicated region
        $region29: #{rgs_net_forward.1} parent=11 // pred_check
          %p293 = pneg %p177
        $region30: #{rgs_net_forward.1} parent=11 // pred_check_branch
          %295 = sbr.rel (%p293) target = $region32
        $region31: #{rgs_net_forward.1} parent=11 // pred_region
          _
        $region32: #{rgs_net_forward.1} parent=11 // pred_fallthru
          _
        // Predicated region
        $region33: #{rgs_net_forward.1} parent=11 // pred_check
          %p296 = pneg %p198
        $region34: #{rgs_net_forward.1} parent=11 // pred_check_branch
          %298 = sbr.rel (%p296) target = $region36
        $region35: #{rgs_net_forward.1} parent=11 // pred_region
          _
        $region36: #{rgs_net_forward.1} parent=11 // pred_fallthru
          _
        // Predicated region
        $region37: #{rgs_net_forward.1} parent=11 // pred_check
          %p299 = pneg %p219
        $region38: #{rgs_net_forward.1} parent=11 // pred_check_branch
          %301 = sbr.rel (%p299) target = $region40
        $region39: #{rgs_net_forward.1} parent=11 // pred_region
          _
        $region40: #{rgs_net_forward.1} parent=11 // pred_fallthru
          _
        // Predicated region
        $region41: #{rgs_net_forward.1} parent=11 // pred_check
          %p302 = pneg %p240
        $region42: #{rgs_net_forward.1} parent=11 // pred_check_branch
          %304 = sbr.rel (%p302) target = $region44
        $region43: #{rgs_net_forward.1} parent=11 // pred_region
          _
        $region44: #{rgs_net_forward.1} parent=11 // pred_fallthru
          _
      $region12: #{rgs_net_forward.1} parent=5 // pred_fallthru
        _
      %p305 = scmp.lt.s32.totalorder %s20, 2
      // Predicated region
      $region45: #{rgs_net_forward.1} parent=5 // pred_check
        %p306 = pneg %p305
      $region46: #{rgs_net_forward.1} parent=5 // pred_check_branch
        %308 = sbr.rel (%p306) target = $region48
      $region47: #{rgs_net_forward.1} parent=5 // pred_region
        // Predicated region
        $region49: #{rgs_net_forward.1} parent=47 // pred_check
          %p309 = pneg %p40
        $region50: #{rgs_net_forward.1} parent=47 // pred_check_branch
          %311 = sbr.rel (%p309) target = $region52
        $region51: #{rgs_net_forward.1} parent=47 // pred_region
          %s312 = smul.u32 16, %s20
          %p313 = scmp.lt.s32.totalorder %s312, 31
          %s314 = scalar_select %p313, %s312, 31
          %s315 = smul.addr %s314, 8
          %s316 = scalar_lea.vmem %s0, %s315
          %s317 = smul.u32 16, %s20
        $region52: #{rgs_net_forward.1} parent=47 // pred_fallthru
          _
        // Predicated region
        $region53: #{rgs_net_forward.1} parent=47 // pred_check
          %p318 = pneg %p66
        $region54: #{rgs_net_forward.1} parent=47 // pred_check_branch
          %320 = sbr.rel (%p318) target = $region56
        $region55: #{rgs_net_forward.1} parent=47 // pred_region
          %s321 = smul.u32 16, %s20
          %p322 = scmp.lt.s32.totalorder %s321, 31
          %s323 = scalar_select %p322, %s321, 31
          %s324 = smul.addr %s323, 8
          %s325 = scalar_lea.vmem %s1, %s324
          %s326 = smul.u32 16, %s20
        $region56: #{rgs_net_forward.1} parent=47 // pred_fallthru
          _
      $region48: #{rgs_net_forward.1} parent=5 // pred_fallthru
        _
      %p327 = scmp.le.s32.totalorder 1, %s20
      %p328 = scmp.lt.s32.totalorder %s20, 3
      %p329 = pnand %p327, %p328
      %p330 = pneg %p329
      // Predicated region
      $region57: #{rgs_net_forward.1} parent=5 // pred_check
        _
      $region58: #{rgs_net_forward.1} parent=5 // pred_check_branch
        %332 = sbr.rel (%p329) target = $region60
      $region59: #{rgs_net_forward.1} parent=5 // pred_region
        %s333 = ssub.s32 %s20, 1
        %s334 = smul.u32 16, %s25
        %p335 = scmp.lt.s32.totalorder %s334, 31
        %s336 = scalar_select %p335, %s334, 31
        %s337 = smul.addr %s336, 8
        %s338 = scalar_lea.vmem %s0, %s337
        %p339 = pneg %p46
        %p340 = pneg %p43
        %s341 = smul.u32 16, %s25
        %p342 = scmp.lt.s32.totalorder %s341, 31
        %s343 = scalar_select %p342, %s341, 31
        %s344 = smul.addr %s343, 8
        %s345 = scalar_lea.vmem %s1, %s344
        %p346 = pneg %p72
        %p347 = pneg %p69
        %p348 = pneg %p93
        %p349 = pneg %p90
        %p350 = pneg %p114
        %p351 = pneg %p111
        %p352 = pneg %p135
        %p353 = pneg %p132
        %p354 = pneg %p156
        %p355 = pneg %p153
        %p356 = pneg %p177
        %p357 = pneg %p174
        %p358 = pneg %p198
        %p359 = pneg %p195
        %p360 = pneg %p219
        %p361 = pneg %p216
        %p362 = pneg %p240
        %p363 = pneg %p237
        %p364 = pneg %p266
        %p365 = pneg %p263
        %s366 = sand.u32 %s253, 1
        %s367 = scalar_lea.sflag [#allocation4], %s366
        %s368 = sand.u32 %s253, 1
        %s369 = scalar_lea.vmem [#allocation3], %s368
        %s370 = smul.u32 16, %s25
        %p371 = scmp.lt.s32.totalorder %s370, 31
        %s372 = scalar_select %p371, %s370, 31
        %s373 = smul.addr %s372, 8
        %s374 = scalar_lea.vmem %s0, %s373
        %s375 = smul.u32 16, %s25
        %s376 = smul.u32 16, %s25
        %p377 = scmp.lt.s32.totalorder %s376, 31
        %s378 = scalar_select %p377, %s376, 31
        %s379 = smul.addr %s378, 8
        %s380 = scalar_lea.vmem %s1, %s379
        %s381 = smul.u32 16, %s25
        %v383 = vld [vmem:[%s374] sm:$0xff]
        %v384 = vld [vmem:[%s374 + $0x8] sm:$0xff]
        %v385 = vld [vmem:[%s374 + $0x10] sm:$0xff]
        %v386 = vld [vmem:[%s374 + $0x18] sm:$0xff]
        %v387 = vld [vmem:[%s374 + $0x20] sm:$0xff]
        %v388 = vld [vmem:[%s374 + $0x28] sm:$0xff]
        %v389 = vld [vmem:[%s374 + $0x30] sm:$0xff]
        %v390 = vld [vmem:[%s374 + $0x38] sm:$0xff]
        %v391 = vld [vmem:[%s374 + $0x40] sm:$0xff]
        %v392 = vld [vmem:[%s374 + $0x48] sm:$0xff]
        %v393 = vld [vmem:[%s374 + $0x50] sm:$0xff]
        %v394 = vld [vmem:[%s374 + $0x58] sm:$0xff]
        %v395 = vld [vmem:[%s374 + $0x60] sm:$0xff]
        %v396 = vld [vmem:[%s374 + $0x68] sm:$0xff]
        %v397 = vld [vmem:[%s374 + $0x70] sm:$0xff]
        %v398 = vld [vmem:[%s374 + $0x78] sm:$0xff]
        %v399 = vld [vmem:[%s380] sm:$0xff]
        %v400 = vld [vmem:[%s380 + $0x8] sm:$0xff]
        %v401 = vld [vmem:[%s380 + $0x10] sm:$0xff]
        %v402 = vld [vmem:[%s380 + $0x18] sm:$0xff]
        %v403 = vld [vmem:[%s380 + $0x20] sm:$0xff]
        %v404 = vld [vmem:[%s380 + $0x28] sm:$0xff]
        %v405 = vld [vmem:[%s380 + $0x30] sm:$0xff]
        %v406 = vld [vmem:[%s380 + $0x38] sm:$0xff]
        %v407 = vld [vmem:[%s380 + $0x40] sm:$0xff]
        %v408 = vld [vmem:[%s380 + $0x48] sm:$0xff]
        %v409 = vld [vmem:[%s380 + $0x50] sm:$0xff]
        %v410 = vld [vmem:[%s380 + $0x58] sm:$0xff]
        %v411 = vld [vmem:[%s380 + $0x60] sm:$0xff]
        %v412 = vld [vmem:[%s380 + $0x68] sm:$0xff]
        %v413 = vld [vmem:[%s380 + $0x70] sm:$0xff]
        %v414 = vld [vmem:[%s380 + $0x78] sm:$0xff]
        %v415 = vpack.c.bf16 %v384, %v383
        %v416 = vpack.c.bf16 %v386, %v385
        %v417 = vpack.c.bf16 %v388, %v387
        %v418 = vpack.c.bf16 %v390, %v389
        %v419 = vpack.c.bf16 %v392, %v391
        %v420 = vpack.c.bf16 %v394, %v393
        %v421 = vpack.c.bf16 %v396, %v395
        %v422 = vpack.c.bf16 %v398, %v397
        %v423 = vld [vmem:[%s2] sm:$0xf]
        %v424 = vld [vmem:[%s2 + $0x4] sm:$0xf]
        %v425 = vld [vmem:[%s2 + $0x8] sm:$0xf]
        %v426 = vld [vmem:[%s2 + $0xc] sm:$0xf]
        %v427 = vld [vmem:[%s3] sm:$0x1]
        %v429 = vlaneseq
        %v430 = vshrl.u32 %v429, 7
        %v431 = vsub.s32 0, %v430
        %v432 = vrot.slane %v427, %v431
        %v438 = vunpack.c.l.b16 %v423
        %v439 = vunpack.c.l.b16 %v424
        %v440 = vunpack.c.l.b16 %v425
        %v441 = vunpack.c.l.b16 %v426
        %v442 = vpack.c.b16 %v439, %v438
        %v443 = vpack.c.b16 %v441, %v440
        %vm446 = vcmask 261120
        %v448 = vsel %vm446, %v415, 0
        %v451 = vsel %vm446, %v416, 0
        %v454 = vsel %vm446, %v417, 0
        %v457 = vsel %vm446, %v418, 0
        %v460 = vsel %vm446, %v419, 0
        %v463 = vsel %vm446, %v420, 0
        %v466 = vsel %vm446, %v421, 0
        %v469 = vsel %vm446, %v422, 0
        %471 = vmatprep.subr.bf16.mxu0 0
        %472 = vmatpush1.bf16.msra.mxu0 0
        %473 = vmatprep.subr.bf16.mxu0 0
        %474 = vmatpush1.bf16.msra.mxu0 0
        %475 = vmatprep.subr.bf16.mxu0 0
        %476 = vmatpush1.bf16.msra.mxu0 0
        %477 = vmatprep.subr.bf16.mxu0 0
        %478 = vmatpush1.bf16.msra.mxu0 0
        %479 = vmatprep.subr.bf16.mxu0 0
        %480 = vmatpush1.bf16.msra.mxu0 0
        %481 = vmatprep.subr.bf16.mxu0 0
        %482 = vmatpush1.bf16.msra.mxu0 0
        %483 = vmatprep.subr.bf16.mxu0 0
        %484 = vmatpush1.bf16.msra.mxu0 %v443
        %485 = vmatprep.subr.bf16.mxu0 0
        %486 = vmatpush1.bf16.msra.mxu0 %v442
        %487 = vmatprep.subr.bf16.mxu0 0
        %488 = vmatpush2.bf16.msra.mxu0 0
        %489 = vmatprep.subr.bf16.mxu0 0
        %490 = vmatpush2.bf16.msra.mxu0 0
        %491 = vmatprep.subr.bf16.mxu0 0
        %492 = vmatpush2.bf16.msra.mxu0 0
        %493 = vmatprep.subr.bf16.mxu0 0
        %494 = vmatpush2.bf16.msra.mxu0 0
        %495 = vmatprep.subr.bf16.mxu0 0
        %496 = vmatpush2.bf16.msra.mxu0 0
        %497 = vmatprep.subr.bf16.mxu0 0
        %498 = vmatpush2.bf16.msra.mxu0 0
        %499 = vmatprep.subr.bf16.mxu0 0
        %500 = vmatpush2.bf16.msra.mxu0 0
        %501 = vmatprep.subr.bf16.mxu0 0
        %502 = vmatpush2.bf16.msra.mxu0 0
        %503 = vmatprep.mubr.bf16.mxu0 0
        %504 = vmatmul.mubr.bf16.gmra.mxu0 %v448
        %v505 = vpop.f32.mrf.mxu0
        %v506 = vadd.f32 %v432, %v505
        %v507 = vpop.f32.mrf.mxu0
        %v508 = vpop.f32.mrf.mxu0
        %v509 = vadd.f32 %v432, %v508
        %v510 = vpop.f32.mrf.mxu0
        %511 = vmatprep.mubr.bf16.mxu0 0
        %512 = vmatmul.mubr.bf16.gmra.mxu0 %v451
        %v513 = vpop.f32.mrf.mxu0
        %v514 = vadd.f32 %v432, %v513
        %v515 = vpop.f32.mrf.mxu0
        %v516 = vpop.f32.mrf.mxu0
        %v517 = vadd.f32 %v432, %v516
        %v518 = vpop.f32.mrf.mxu0
        %519 = vmatprep.mubr.bf16.mxu0 0
        %520 = vmatmul.mubr.bf16.gmra.mxu0 %v454
        %v521 = vpop.f32.mrf.mxu0
        %v522 = vadd.f32 %v432, %v521
        %v523 = vpop.f32.mrf.mxu0
        %v524 = vpop.f32.mrf.mxu0
        %v525 = vadd.f32 %v432, %v524
        %v526 = vpop.f32.mrf.mxu0
        %527 = vmatprep.mubr.bf16.mxu0 0
        %528 = vmatmul.mubr.bf16.gmra.mxu0 %v457
        %v529 = vpop.f32.mrf.mxu0
        %v530 = vadd.f32 %v432, %v529
        %v531 = vpop.f32.mrf.mxu0
        %v532 = vpop.f32.mrf.mxu0
        %v533 = vadd.f32 %v432, %v532
        %v534 = vpop.f32.mrf.mxu0
        %535 = vmatprep.mubr.bf16.mxu0 0
        %536 = vmatmul.mubr.bf16.gmra.mxu0 %v460
        %v537 = vpop.f32.mrf.mxu0
        %v538 = vadd.f32 %v432, %v537
        %v539 = vpop.f32.mrf.mxu0
        %v540 = vpop.f32.mrf.mxu0
        %v541 = vadd.f32 %v432, %v540
        %v542 = vpop.f32.mrf.mxu0
        %543 = vmatprep.mubr.bf16.mxu0 0
        %544 = vmatmul.mubr.bf16.gmra.mxu0 %v463
        %v545 = vpop.f32.mrf.mxu0
        %v546 = vadd.f32 %v432, %v545
        %v547 = vpop.f32.mrf.mxu0
        %v548 = vpop.f32.mrf.mxu0
        %v549 = vadd.f32 %v432, %v548
        %v550 = vpop.f32.mrf.mxu0
        %551 = vmatprep.mubr.bf16.mxu0 0
        %552 = vmatmul.mubr.bf16.gmra.mxu0 %v466
        %v553 = vpop.f32.mrf.mxu0
        %v554 = vadd.f32 %v432, %v553
        %v555 = vpop.f32.mrf.mxu0
        %v556 = vpop.f32.mrf.mxu0
        %v557 = vadd.f32 %v432, %v556
        %v558 = vpop.f32.mrf.mxu0
        %559 = vmatprep.mubr.bf16.mxu0 0
        %560 = vmatmul.mubr.bf16.gmra.mxu0 %v469
        %v561 = vpop.f32.mrf.mxu0
        %v562 = vadd.f32 %v432, %v561
        %v563 = vpop.f32.mrf.mxu0
        %v564 = vpop.f32.mrf.mxu0
        %v565 = vadd.f32 %v432, %v564
        %v566 = vpop.f32.mrf.mxu0
        %567 = vdwg.mxu0
        %v568 = vmax.f32 %v506, 0.0
        %v569 = vmax.f32 %v509, 0.0
        %v570 = vmax.f32 %v514, 0.0
        %v571 = vmax.f32 %v517, 0.0
        %v572 = vmax.f32 %v522, 0.0
        %v573 = vmax.f32 %v525, 0.0
        %v574 = vmax.f32 %v530, 0.0
        %v575 = vmax.f32 %v533, 0.0
        %v576 = vmax.f32 %v538, 0.0
        %v577 = vmax.f32 %v541, 0.0
        %v578 = vmax.f32 %v546, 0.0
        %v579 = vmax.f32 %v549, 0.0
        %v580 = vmax.f32 %v554, 0.0
        %v581 = vmax.f32 %v557, 0.0
        %v582 = vmax.f32 %v562, 0.0
        %v583 = vmax.f32 %v565, 0.0
        %600 = vrot.lane.b32.xlu0 %v399, 16
        %v601 = vpop.permute.xlu0 %600
        %602 = vrot.lane.b32.xlu0 %v400, 16
        %v603 = vpop.permute.xlu0 %602
        %604 = vrot.lane.b32.xlu0 %v401, 16
        %v605 = vpop.permute.xlu0 %604
        %606 = vrot.lane.b32.xlu0 %v402, 16
        %v607 = vpop.permute.xlu0 %606
        %608 = vrot.lane.b32.xlu0 %v403, 16
        %v609 = vpop.permute.xlu0 %608
        %610 = vrot.lane.b32.xlu0 %v404, 16
        %v611 = vpop.permute.xlu0 %610
        %612 = vrot.lane.b32.xlu0 %v405, 16
        %v613 = vpop.permute.xlu0 %612
        %614 = vrot.lane.b32.xlu0 %v406, 16
        %v615 = vpop.permute.xlu0 %614
        %616 = vrot.lane.b32.xlu0 %v407, 16
        %v617 = vpop.permute.xlu0 %616
        %618 = vrot.lane.b32.xlu0 %v408, 16
        %v619 = vpop.permute.xlu0 %618
        %620 = vrot.lane.b32.xlu0 %v409, 16
        %v621 = vpop.permute.xlu0 %620
        %622 = vrot.lane.b32.xlu0 %v410, 16
        %v623 = vpop.permute.xlu0 %622
        %624 = vrot.lane.b32.xlu0 %v411, 16
        %v625 = vpop.permute.xlu0 %624
        %626 = vrot.lane.b32.xlu0 %v412, 16
        %v627 = vpop.permute.xlu0 %626
        %628 = vrot.lane.b32.xlu0 %v413, 16
        %v629 = vpop.permute.xlu0 %628
        %630 = vrot.lane.b32.xlu0 %v414, 16
        %v631 = vpop.permute.xlu0 %630
        %vm648 = vcmask 130048
        %v649 = vsel %vm648, %v568, %v601
        %v650 = vsel %vm648, %v569, %v603
        %v651 = vsel %vm648, %v570, %v605
        %v652 = vsel %vm648, %v571, %v607
        %v653 = vsel %vm648, %v572, %v609
        %v654 = vsel %vm648, %v573, %v611
        %v655 = vsel %vm648, %v574, %v613
        %v656 = vsel %vm648, %v575, %v615
        %v657 = vsel %vm648, %v576, %v617
        %v658 = vsel %vm648, %v577, %v619
        %v659 = vsel %vm648, %v578, %v621
        %v660 = vsel %vm648, %v579, %v623
        %v661 = vsel %vm648, %v580, %v625
        %v662 = vsel %vm648, %v581, %v627
        %v663 = vsel %vm648, %v582, %v629
        %v664 = vsel %vm648, %v583, %v631
        %v665 = vpack.c.bf16 %v650, %v649
        %v666 = vpack.c.bf16 %v652, %v651
        %v667 = vpack.c.bf16 %v654, %v653
        %v668 = vpack.c.bf16 %v656, %v655
        %v669 = vpack.c.bf16 %v658, %v657
        %v670 = vpack.c.bf16 %v660, %v659
        %v671 = vpack.c.bf16 %v662, %v661
        %v672 = vpack.c.bf16 %v664, %v663
        %v673 = vld [vmem:[%s4] sm:$0xf]
        %v674 = vld [vmem:[%s4 + $0x4] sm:$0xf]
        %v675 = vld [vmem:[%s4 + $0x8] sm:$0xf]
        %v676 = vld [vmem:[%s5] sm:$0x1]
        %v678 = vlaneseq
        %v679 = vshrl.u32 %v678, 7
        %v680 = vsub.s32 0, %v679
        %v681 = vrot.slane %v676, %v680
        %v686 = vunpack.c.l.b16 %v673
        %v687 = vunpack.c.l.b16 %v674
        %v688 = vunpack.c.l.b16 %v675
        %v689 = vpack.c.b16 %v687, %v686
        %v690 = vpack.c.b16 %v688, %v688
        %vm692 = vcmask 195584
        %v694 = vsel %vm692, %v665, 0
        %v697 = vsel %vm692, %v666, 0
        %v700 = vsel %vm692, %v667, 0
        %v703 = vsel %vm692, %v668, 0
        %v706 = vsel %vm692, %v669, 0
        %v709 = vsel %vm692, %v670, 0
        %v712 = vsel %vm692, %v671, 0
        %v715 = vsel %vm692, %v672, 0
        %vm717 = vcmask 1043456
        %v719 = vsel %vm717, %v690, 0
        %721 = vmatprep.subr.bf16.mxu0 0
        %722 = vmatpush1.bf16.msra.mxu0 0
        %723 = vmatprep.subr.bf16.mxu0 0
        %724 = vmatpush1.bf16.msra.mxu0 0
        %725 = vmatprep.subr.bf16.mxu0 0
        %726 = vmatpush1.bf16.msra.mxu0 0
        %727 = vmatprep.subr.bf16.mxu0 0
        %728 = vmatpush1.bf16.msra.mxu0 0
        %729 = vmatprep.subr.bf16.mxu0 0
        %730 = vmatpush1.bf16.msra.mxu0 0
        %731 = vmatprep.subr.bf16.mxu0 0
        %732 = vmatpush1.bf16.msra.mxu0 0
        %733 = vmatprep.subr.bf16.mxu0 0
        %734 = vmatpush1.bf16.msra.mxu0 %v719
        %735 = vmatprep.subr.bf16.mxu0 0
        %736 = vmatpush1.bf16.msra.mxu0 %v689
        %737 = vmatprep.subr.bf16.mxu0 0
        %738 = vmatpush2.bf16.msra.mxu0 0
        %739 = vmatprep.subr.bf16.mxu0 0
        %740 = vmatpush2.bf16.msra.mxu0 0
        %741 = vmatprep.subr.bf16.mxu0 0
        %742 = vmatpush2.bf16.msra.mxu0 0
        %743 = vmatprep.subr.bf16.mxu0 0
        %744 = vmatpush2.bf16.msra.mxu0 0
        %745 = vmatprep.subr.bf16.mxu0 0
        %746 = vmatpush2.bf16.msra.mxu0 0
        %747 = vmatprep.subr.bf16.mxu0 0
        %748 = vmatpush2.bf16.msra.mxu0 0
        %749 = vmatprep.subr.bf16.mxu0 0
        %750 = vmatpush2.bf16.msra.mxu0 0
        %751 = vmatprep.subr.bf16.mxu0 0
        %752 = vmatpush2.bf16.msra.mxu0 0
        %753 = vmatprep.mubr.bf16.mxu0 0
        %754 = vmatmul.mubr.bf16.gmra.mxu0 %v694
        %v755 = vpop.f32.mrf.mxu0
        %v756 = vadd.f32 %v681, %v755
        %v757 = vpop.f32.mrf.mxu0
        %v758 = vpop.f32.mrf.mxu0
        %v759 = vadd.f32 %v681, %v758
        %v760 = vpop.f32.mrf.mxu0
        %761 = vmatprep.mubr.bf16.mxu0 0
        %762 = vmatmul.mubr.bf16.gmra.mxu0 %v697
        %v763 = vpop.f32.mrf.mxu0
        %v764 = vadd.f32 %v681, %v763
        %v765 = vpop.f32.mrf.mxu0
        %v766 = vpop.f32.mrf.mxu0
        %v767 = vadd.f32 %v681, %v766
        %v768 = vpop.f32.mrf.mxu0
        %769 = vmatprep.mubr.bf16.mxu0 0
        %770 = vmatmul.mubr.bf16.gmra.mxu0 %v700
        %v771 = vpop.f32.mrf.mxu0
        %v772 = vadd.f32 %v681, %v771
        %v773 = vpop.f32.mrf.mxu0
        %v774 = vpop.f32.mrf.mxu0
        %v775 = vadd.f32 %v681, %v774
        %v776 = vpop.f32.mrf.mxu0
        %777 = vmatprep.mubr.bf16.mxu0 0
        %778 = vmatmul.mubr.bf16.gmra.mxu0 %v703
        %v779 = vpop.f32.mrf.mxu0
        %v780 = vadd.f32 %v681, %v779
        %v781 = vpop.f32.mrf.mxu0
        %v782 = vpop.f32.mrf.mxu0
        %v783 = vadd.f32 %v681, %v782
        %v784 = vpop.f32.mrf.mxu0
        %785 = vmatprep.mubr.bf16.mxu0 0
        %786 = vmatmul.mubr.bf16.gmra.mxu0 %v706
        %v787 = vpop.f32.mrf.mxu0
        %v788 = vadd.f32 %v681, %v787
        %v789 = vpop.f32.mrf.mxu0
        %v790 = vpop.f32.mrf.mxu0
        %v791 = vadd.f32 %v681, %v790
        %v792 = vpop.f32.mrf.mxu0
        %793 = vmatprep.mubr.bf16.mxu0 0
        %794 = vmatmul.mubr.bf16.gmra.mxu0 %v709
        %v795 = vpop.f32.mrf.mxu0
        %v796 = vadd.f32 %v681, %v795
        %v797 = vpop.f32.mrf.mxu0
        %v798 = vpop.f32.mrf.mxu0
        %v799 = vadd.f32 %v681, %v798
        %v800 = vpop.f32.mrf.mxu0
        %801 = vmatprep.mubr.bf16.mxu0 0
        %802 = vmatmul.mubr.bf16.gmra.mxu0 %v712
        %v803 = vpop.f32.mrf.mxu0
        %v804 = vadd.f32 %v681, %v803
        %v805 = vpop.f32.mrf.mxu0
        %v806 = vpop.f32.mrf.mxu0
        %v807 = vadd.f32 %v681, %v806
        %v808 = vpop.f32.mrf.mxu0
        %809 = vmatprep.mubr.bf16.mxu0 0
        %810 = vmatmul.mubr.bf16.gmra.mxu0 %v715
        %v811 = vpop.f32.mrf.mxu0
        %v812 = vadd.f32 %v681, %v811
        %v813 = vpop.f32.mrf.mxu0
        %v814 = vpop.f32.mrf.mxu0
        %v815 = vadd.f32 %v681, %v814
        %v816 = vpop.f32.mrf.mxu0
        %817 = vdwg.mxu0
        %v818 = vmax.f32 %v756, 0.0
        %v819 = vmax.f32 %v759, 0.0
        %v820 = vmax.f32 %v764, 0.0
        %v821 = vmax.f32 %v767, 0.0
        %v822 = vmax.f32 %v772, 0.0
        %v823 = vmax.f32 %v775, 0.0
        %v824 = vmax.f32 %v780, 0.0
        %v825 = vmax.f32 %v783, 0.0
        %v826 = vmax.f32 %v788, 0.0
        %v827 = vmax.f32 %v791, 0.0
        %v828 = vmax.f32 %v796, 0.0
        %v829 = vmax.f32 %v799, 0.0
        %v830 = vmax.f32 %v804, 0.0
        %v831 = vmax.f32 %v807, 0.0
        %v832 = vmax.f32 %v812, 0.0
        %v833 = vmax.f32 %v815, 0.0
        %v834 = vpack.c.bf16 %v819, %v818
        %v835 = vpack.c.bf16 %v821, %v820
        %v836 = vpack.c.bf16 %v823, %v822
        %v837 = vpack.c.bf16 %v825, %v824
        %v838 = vpack.c.bf16 %v827, %v826
        %v839 = vpack.c.bf16 %v829, %v828
        %v840 = vpack.c.bf16 %v831, %v830
        %v841 = vpack.c.bf16 %v833, %v832
        %v842 = vld [vmem:[%s6] sm:$0xf]
        %v843 = vld [vmem:[%s6 + $0x4] sm:$0xf]
        %v844 = vld [vmem:[%s6 + $0x8] sm:$0xf]
        %v845 = vld [vmem:[%s6 + $0xc] sm:$0xf]
        %v846 = vld [vmem:[%s7] sm:$0x1]
        %v848 = vlaneseq
        %v849 = vshrl.u32 %v848, 7
        %v850 = vsub.s32 0, %v849
        %v851 = vrot.slane %v846, %v850
        %v857 = vunpack.c.l.b16 %v842
        %v858 = vunpack.c.l.b16 %v843
        %v859 = vunpack.c.l.b16 %v844
        %v860 = vunpack.c.l.b16 %v845
        %v861 = vpack.c.b16 %v858, %v857
        %v862 = vpack.c.b16 %v860, %v859
        %v866 = vsel %vm446, %v834, 0
        %v869 = vsel %vm446, %v835, 0
        %v872 = vsel %vm446, %v836, 0
        %v875 = vsel %vm446, %v837, 0
        %v878 = vsel %vm446, %v838, 0
        %v881 = vsel %vm446, %v839, 0
        %v884 = vsel %vm446, %v840, 0
        %v887 = vsel %vm446, %v841, 0
        %889 = vmatprep.subr.bf16.mxu0 0
        %890 = vmatpush1.bf16.msra.mxu0 0
        %891 = vmatprep.subr.bf16.mxu0 0
        %892 = vmatpush1.bf16.msra.mxu0 0
        %893 = vmatprep.subr.bf16.mxu0 0
        %894 = vmatpush1.bf16.msra.mxu0 0
        %895 = vmatprep.subr.bf16.mxu0 0
        %896 = vmatpush1.bf16.msra.mxu0 0
        %897 = vmatprep.subr.bf16.mxu0 0
        %898 = vmatpush1.bf16.msra.mxu0 0
        %899 = vmatprep.subr.bf16.mxu0 0
        %900 = vmatpush1.bf16.msra.mxu0 0
        %901 = vmatprep.subr.bf16.mxu0 0
        %902 = vmatpush1.bf16.msra.mxu0 %v862
        %903 = vmatprep.subr.bf16.mxu0 0
        %904 = vmatpush1.bf16.msra.mxu0 %v861
        %905 = vmatprep.subr.bf16.mxu0 0
        %906 = vmatpush2.bf16.msra.mxu0 0
        %907 = vmatprep.subr.bf16.mxu0 0
        %908 = vmatpush2.bf16.msra.mxu0 0
        %909 = vmatprep.subr.bf16.mxu0 0
        %910 = vmatpush2.bf16.msra.mxu0 0
        %911 = vmatprep.subr.bf16.mxu0 0
        %912 = vmatpush2.bf16.msra.mxu0 0
        %913 = vmatprep.subr.bf16.mxu0 0
        %914 = vmatpush2.bf16.msra.mxu0 0
        %915 = vmatprep.subr.bf16.mxu0 0
        %916 = vmatpush2.bf16.msra.mxu0 0
        %917 = vmatprep.subr.bf16.mxu0 0
        %918 = vmatpush2.bf16.msra.mxu0 0
        %919 = vmatprep.subr.bf16.mxu0 0
        %920 = vmatpush2.bf16.msra.mxu0 0
        %921 = vmatprep.mubr.bf16.mxu0 0
        %922 = vmatmul.mubr.bf16.gmra.mxu0 %v866
        %v923 = vpop.f32.mrf.mxu0
        %v924 = vadd.f32 %v851, %v923
        %v925 = vpop.f32.mrf.mxu0
        %v926 = vpop.f32.mrf.mxu0
        %v927 = vadd.f32 %v851, %v926
        %v928 = vpop.f32.mrf.mxu0
        %929 = vmatprep.mubr.bf16.mxu0 0
        %930 = vmatmul.mubr.bf16.gmra.mxu0 %v869
        %v931 = vpop.f32.mrf.mxu0
        %v932 = vadd.f32 %v851, %v931
        %v933 = vpop.f32.mrf.mxu0
        %v934 = vpop.f32.mrf.mxu0
        %v935 = vadd.f32 %v851, %v934
        %v936 = vpop.f32.mrf.mxu0
        %937 = vmatprep.mubr.bf16.mxu0 0
        %938 = vmatmul.mubr.bf16.gmra.mxu0 %v872
        %v939 = vpop.f32.mrf.mxu0
        %v940 = vadd.f32 %v851, %v939
        %v941 = vpop.f32.mrf.mxu0
        %v942 = vpop.f32.mrf.mxu0
        %v943 = vadd.f32 %v851, %v942
        %v944 = vpop.f32.mrf.mxu0
        %945 = vmatprep.mubr.bf16.mxu0 0
        %946 = vmatmul.mubr.bf16.gmra.mxu0 %v875
        %v947 = vpop.f32.mrf.mxu0
        %v948 = vadd.f32 %v851, %v947
        %v949 = vpop.f32.mrf.mxu0
        %v950 = vpop.f32.mrf.mxu0
        %v951 = vadd.f32 %v851, %v950
        %v952 = vpop.f32.mrf.mxu0
        %953 = vmatprep.mubr.bf16.mxu0 0
        %954 = vmatmul.mubr.bf16.gmra.mxu0 %v878
        %v955 = vpop.f32.mrf.mxu0
        %v956 = vadd.f32 %v851, %v955
        %v957 = vpop.f32.mrf.mxu0
        %v958 = vpop.f32.mrf.mxu0
        %v959 = vadd.f32 %v851, %v958
        %v960 = vpop.f32.mrf.mxu0
        %961 = vmatprep.mubr.bf16.mxu0 0
        %962 = vmatmul.mubr.bf16.gmra.mxu0 %v881
        %v963 = vpop.f32.mrf.mxu0
        %v964 = vadd.f32 %v851, %v963
        %v965 = vpop.f32.mrf.mxu0
        %v966 = vpop.f32.mrf.mxu0
        %v967 = vadd.f32 %v851, %v966
        %v968 = vpop.f32.mrf.mxu0
        %969 = vmatprep.mubr.bf16.mxu0 0
        %970 = vmatmul.mubr.bf16.gmra.mxu0 %v884
        %v971 = vpop.f32.mrf.mxu0
        %v972 = vadd.f32 %v851, %v971
        %v973 = vpop.f32.mrf.mxu0
        %v974 = vpop.f32.mrf.mxu0
        %v975 = vadd.f32 %v851, %v974
        %v976 = vpop.f32.mrf.mxu0
        %977 = vmatprep.mubr.bf16.mxu0 0
        %978 = vmatmul.mubr.bf16.gmra.mxu0 %v887
        %v979 = vpop.f32.mrf.mxu0
        %v980 = vadd.f32 %v851, %v979
        %v981 = vpop.f32.mrf.mxu0
        %v982 = vpop.f32.mrf.mxu0
        %v983 = vadd.f32 %v851, %v982
        %v984 = vpop.f32.mrf.mxu0
        %985 = vdwg.mxu0
        %v986 = vmax.f32 %v924, 0.0
        %v987 = vmax.f32 %v927, 0.0
        %v988 = vmax.f32 %v932, 0.0
        %v989 = vmax.f32 %v935, 0.0
        %v990 = vmax.f32 %v940, 0.0
        %v991 = vmax.f32 %v943, 0.0
        %v992 = vmax.f32 %v948, 0.0
        %v993 = vmax.f32 %v951, 0.0
        %v994 = vmax.f32 %v956, 0.0
        %v995 = vmax.f32 %v959, 0.0
        %v996 = vmax.f32 %v964, 0.0
        %v997 = vmax.f32 %v967, 0.0
        %v998 = vmax.f32 %v972, 0.0
        %v999 = vmax.f32 %v975, 0.0
        %v1000 = vmax.f32 %v980, 0.0
        %v1001 = vmax.f32 %v983, 0.0
        %v1002 = vld [vmem:[%s8] sm:$0x1]
        %s1003 = sld [smem:[#allocation2]]
        %v1004 = vstv %s1003
        %v1006 = vsel %vm446, %v1002, 0
        %v1009 = vsel %vm446, %v986, 0
        %v1012 = vsel %vm446, %v987, 0
        %v1015 = vsel %vm446, %v988, 0
        %v1018 = vsel %vm446, %v989, 0
        %v1021 = vsel %vm446, %v990, 0
        %v1024 = vsel %vm446, %v991, 0
        %v1027 = vsel %vm446, %v992, 0
        %v1030 = vsel %vm446, %v993, 0
        %v1033 = vsel %vm446, %v994, 0
        %v1036 = vsel %vm446, %v995, 0
        %v1039 = vsel %vm446, %v996, 0
        %v1042 = vsel %vm446, %v997, 0
        %v1045 = vsel %vm446, %v998, 0
        %v1048 = vsel %vm446, %v999, 0
        %v1051 = vsel %vm446, %v1000, 0
        %v1054 = vsel %vm446, %v1001, 0
        %1056 = vmatprep.subr.mxu0 0.0
        %1057 = vmatpush1.xpose.msra.mxu0 %v1054
        %1058 = vmatprep.subr.mxu0 0.0
        %1059 = vmatpush1.xpose.msra.mxu0 %v1051
        %1060 = vmatprep.subr.mxu0 0.0
        %1061 = vmatpush1.xpose.msra.mxu0 %v1048
        %1062 = vmatprep.subr.mxu0 0.0
        %1063 = vmatpush1.xpose.msra.mxu0 %v1045
        %1064 = vmatprep.subr.mxu0 0.0
        %1065 = vmatpush1.xpose.msra.mxu0 %v1042
        %1066 = vmatprep.subr.mxu0 0.0
        %1067 = vmatpush1.xpose.msra.mxu0 %v1039
        %1068 = vmatprep.subr.mxu0 0.0
        %1069 = vmatpush1.xpose.msra.mxu0 %v1036
        %1070 = vmatprep.subr.mxu0 0.0
        %1071 = vmatpush1.xpose.msra.mxu0 %v1033
        %1072 = vmatprep.subr.mxu0 0.0
        %1073 = vmatpush1.xpose.msra.mxu0 %v1030
        %1074 = vmatprep.subr.mxu0 0.0
        %1075 = vmatpush1.xpose.msra.mxu0 %v1027
        %1076 = vmatprep.subr.mxu0 0.0
        %1077 = vmatpush1.xpose.msra.mxu0 %v1024
        %1078 = vmatprep.subr.mxu0 0.0
        %1079 = vmatpush1.xpose.msra.mxu0 %v1021
        %1080 = vmatprep.subr.mxu0 0.0
        %1081 = vmatpush1.xpose.msra.mxu0 %v1018
        %1082 = vmatprep.subr.mxu0 0.0
        %1083 = vmatpush1.xpose.msra.mxu0 %v1015
        %1084 = vmatprep.subr.mxu0 0.0
        %1085 = vmatpush1.xpose.msra.mxu0 %v1012
        %1086 = vmatprep.subr.mxu0 0.0
        %1087 = vmatpush1.xpose.msra.mxu0 %v1009
        %1088 = vmatprep.subr.mxu0 0.0
        %1089 = vmatpush2.xpose.msra.mxu0 0.0
        %1090 = vmatprep.subr.mxu0 0.0
        %1091 = vmatpush2.xpose.msra.mxu0 0.0
        %1092 = vmatprep.subr.mxu0 0.0
        %1093 = vmatpush2.xpose.msra.mxu0 0.0
        %1094 = vmatprep.subr.mxu0 0.0
        %1095 = vmatpush2.xpose.msra.mxu0 0.0
        %1096 = vmatprep.subr.mxu0 0.0
        %1097 = vmatpush2.xpose.msra.mxu0 0.0
        %1098 = vmatprep.subr.mxu0 0.0
        %1099 = vmatpush2.xpose.msra.mxu0 0.0
        %1100 = vmatprep.subr.mxu0 0.0
        %1101 = vmatpush2.xpose.msra.mxu0 0.0
        %1102 = vmatprep.subr.mxu0 0.0
        %1103 = vmatpush2.xpose.msra.mxu0 0.0
        %1104 = vmatprep.subr.mxu0 0.0
        %1105 = vmatpush2.xpose.msra.mxu0 0.0
        %1106 = vmatprep.subr.mxu0 0.0
        %1107 = vmatpush2.xpose.msra.mxu0 0.0
        %1108 = vmatprep.subr.mxu0 0.0
        %1109 = vmatpush2.xpose.msra.mxu0 0.0
        %1110 = vmatprep.subr.mxu0 0.0
        %1111 = vmatpush2.xpose.msra.mxu0 0.0
        %1112 = vmatprep.subr.mxu0 0.0
        %1113 = vmatpush2.xpose.msra.mxu0 0.0
        %1114 = vmatprep.subr.mxu0 0.0
        %1115 = vmatpush2.xpose.msra.mxu0 0.0
        %1116 = vmatprep.subr.mxu0 0.0
        %1117 = vmatpush2.xpose.msra.mxu0 0.0
        %1118 = vmatprep.subr.mxu0 0.0
        %1119 = vmatpush2.xpose.msra.mxu0 0.0
        %1120 = vmatprep.mubr.f32.mxu0 0.0
        %1121 = vmatmul.mubr.f32.gmra.mxu0 %v1006
        %v1122 = vpop.f32.mrf.mxu0
        %v1123 = vadd.f32 %v1004, %v1122
        %v1124 = vpop.f32.mrf.mxu0
        %1125 = vdwg.mxu0
        %v1126 = vxor.u32 %v1123, 2147483648
        %v1127 = vmul.f32 %v1126, 1.442695
        %v1128 = vpow.pop %v1127
        %v1129 = vadd.f32 %v1128, 1.0
        %v1130 = vrcp.pop %v1129
        %v1131 = vmul.f32 1.0, %v1130
        %1132 = vst [vmem:[%s369] sm:$0x1] %v1131
        %s1133 = sand.u32 %s253, 1
        %s1134 = scalar_lea.sflag [#allocation4], %s1133
        %s1135 = sand.u32 %s253, 1
        %s1136 = scalar_lea.vmem [#allocation3], %s1135
        // Predicated region
        $region61: #{rgs_net_forward.1} parent=59 // pred_check
          %p1137 = pneg %p263
        $region62: #{rgs_net_forward.1} parent=59 // pred_check_branch
          %1139 = sbr.rel (%p1137) target = $region64
        $region63: #{rgs_net_forward.1} parent=59 // pred_region
          %s1141 = ssub.s32 16, 16
          %1142 = vsyncadd %s1134, %s1141
          %s1143 = smul.addr %s25, 16
          %s1144 = scalar_lea.hbm %s10, %s1143
          %s1146 = sshll.u32 %s1136, 4
          %s1147 = int_to_ptr.vmem [resolvable:$true] %s1146
          %1149 = dma.vmem_to_hbm [thread:$0]  %s1147, 16, %s1144, %s1134
        $region64: #{rgs_net_forward.1} parent=59 // pred_fallthru
          _
      $region60: #{rgs_net_forward.1} parent=5 // pred_fallthru
        _
      %p1150 = scmp.le.s32.totalorder 2, %s20
      // Predicated region
      $region65: #{rgs_net_forward.1} parent=5 // pred_check
        %p1151 = pneg %p1150
      $region66: #{rgs_net_forward.1} parent=5 // pred_check_branch
        %1153 = sbr.rel (%p1151) target = $region68
      $region67: #{rgs_net_forward.1} parent=5 // pred_region
        %s1154 = ssub.s32 %s20, 2
        // Predicated region
        $region69: #{rgs_net_forward.1} parent=67 // pred_check
          %p1155 = pneg %p269
        $region70: #{rgs_net_forward.1} parent=67 // pred_check_branch
          %1157 = sbr.rel (%p1155) target = $region72
        $region71: #{rgs_net_forward.1} parent=67 // pred_region
          %s1158 = sand.u32 %s254, 1
          %s1159 = scalar_lea.sflag [#allocation4], %s1158
          %s1160 = sand.u32 %s254, 1
          %s1161 = scalar_lea.vmem [#allocation3], %s1160
          %1162 = dma.done %s1159, 16
        $region72: #{rgs_net_forward.1} parent=67 // pred_fallthru
          _
      $region68: #{rgs_net_forward.1} parent=5 // pred_fallthru
        _
    $region6: #{rgs_net_forward.1} parent=1 // loop_footer
      %s24 = sadd.s32 1, %s20
    $region7: #{rgs_net_forward.1} parent=1 // loop_footer_branch
      %19 = sbr.rel target = $region3
    $region8: #{rgs_net_forward.1} parent=1 // loop_exit
      _
    %1163 = vsyncpa [#allocation4], 1
    %s1164 = scalar_lea.sflag [#allocation4], 1
    %1165 = vsyncpa %s1164, 1

</llo_original>
